<compile_context>
chip_gen: v6e
topology: v6e:2x2x1
jax: 0.10.0
libtpu: 0.0.40
codegen_flags: <defaults>
</compile_context>

<pallas_src>
import functools

import jax
import jax.numpy as jnp
from jax.experimental import pallas as pl
from jax.experimental.pallas import tpu as pltpu

ACT_DTYPE = jnp.bfloat16          # storage dtype for activations between layers
TM_GEMM = 256                     # M tile for the im2col GEMM path (stride-2 convs)
TOC_MAX = 128                     # output-channel tile for the direct conv kernels
POOL_TM = 512                     # M tile for the max-pool kernel
VMEM_LIMIT = 48 * 1024 * 1024     # headroom on v7x's 64 MiB physical VMEM


def _round_up(x, m):
    return (x + m - 1) // m * m


# ============================================================================
# Pallas kernels
# ============================================================================
def _conv3x3_body(x_ref, w_ref, b_ref, m_ref, res_ref, o_ref, *, WP, M, act):
    """Direct 3x3 / stride-1 / pad-1 conv on one image (padded-flat layout).

    x_ref : (1, L, C)    bf16  flat padded input, L >= (H+2)*(W+2)+2
    w_ref : (9, C, OCt)  bf16  per-tap weights, BN scale folded in
    b_ref : (1, OCt)     f32   folded BN shift
    m_ref : (M, 1)       bf16  0/1 mask zeroing the row-wrap-around columns
    res   : (1, L, OCt)  bf16  optional residual (same padded-flat layout)
    o_ref : (1, L, OCt)  bf16  flat padded output (zero border re-established)
    """
    oc = o_ref.shape[2]
    acc = jnp.zeros((M, oc), jnp.float32)
    for kh in range(3):
        for kw in range(3):
            off = kh * WP + kw            # static shifted window per tap
            acc = acc + jnp.dot(x_ref[0, off:off + M, :],
                                w_ref[kh * 3 + kw],
                                preferred_element_type=jnp.float32)
    y = acc + b_ref[...]
    if res_ref is not None:
        y = y + res_ref[0, WP + 1:WP + 1 + M, :].astype(jnp.float32)
    if act == "relu":
        y = jnp.maximum(y, 0.0)
    y = y * m_ref[...].astype(jnp.float32)     # zero the wrap-around columns
    o_ref[...] = jnp.zeros_like(o_ref)         # zero border rows / tail
    o_ref[0, WP + 1:WP + 1 + M, :] = y.astype(o_ref.dtype)


def _conv3x3_kernel(x_ref, w_ref, b_ref, m_ref, o_ref, *, WP, M, act):
    _conv3x3_body(x_ref, w_ref, b_ref, m_ref, None, o_ref, WP=WP, M=M, act=act)


def _conv3x3_res_kernel(x_ref, w_ref, b_ref, m_ref, res_ref, o_ref, *, WP, M, act):
    _conv3x3_body(x_ref, w_ref, b_ref, m_ref, res_ref, o_ref, WP=WP, M=M, act=act)


def _gemm_bias_act_kernel(x_ref, w_ref, b_ref, o_ref, *, act):
    # out = act(x @ w + bias); bf16 operands, f32 accumulate.
    y = jnp.dot(x_ref[...], w_ref[...], preferred_element_type=jnp.float32)
    y = y + b_ref[...]
    if act == "relu":
        y = jnp.maximum(y, 0.0)
    o_ref[...] = y.astype(o_ref.dtype)


def _maxpool9_kernel(x_ref, o_ref):
    # max over the 9 pooling taps (leading axis) for one M tile.
    r = x_ref[0]
    for k in range(1, 9):
        r = jnp.maximum(r, x_ref[k])
    o_ref[...] = r


# ============================================================================
# Padded-flat activation layout helpers (plain-JAX, layout only)
# ============================================================================
def _flat_len(H, W):
    return _round_up((H + 2) * (W + 2) + 2, 8)


def to_padded_flat(x_nhwc):
    N, H, W, C = x_nhwc.shape
    HP, WP = H + 2, W + 2
    L = _flat_len(H, W)
    xp = jnp.pad(x_nhwc, ((0, 0), (1, 1), (1, 1), (0, 0)))
    xf = xp.reshape(N, HP * WP, C)
    xf = jnp.pad(xf, ((0, 0), (0, L - HP * WP), (0, 0)))
    return xf.astype(ACT_DTYPE)


def from_padded_flat(x_flat, H, W):
    N, _, C = x_flat.shape
    HP, WP = H + 2, W + 2
    x = x_flat[:, :HP * WP, :].reshape(N, HP, WP, C)
    return x[:, 1:1 + H, 1:1 + W, :]


def make_col_mask(H, W):
    WP = W + 2
    col = jnp.arange(H * WP, dtype=jnp.int32) % WP
    return (col < W).astype(ACT_DTYPE).reshape(H * WP, 1)


# ============================================================================
# Pallas wrappers
# ============================================================================
def conv3x3_s1(x_flat, w_taps, bias, mask, H, W, act="relu", residual=None):
    """Direct stride-1 3x3 conv + folded BN + optional residual + act, fused."""
    N, L, C = x_flat.shape
    OC = w_taps.shape[2]
    WP = W + 2
    M = H * WP
    toc = OC if OC <= TOC_MAX else TOC_MAX
    n_oc = OC // toc

    in_specs = [
        pl.BlockSpec((1, L, C), lambda n, j: (n, 0, 0)),
        pl.BlockSpec((9, C, toc), lambda n, j: (0, 0, j)),
        pl.BlockSpec((1, toc), lambda n, j: (0, j)),
        pl.BlockSpec((M, 1), lambda n, j: (0, 0)),
    ]
    args = [x_flat, w_taps, bias, mask]
    if residual is not None:
        in_specs.append(pl.BlockSpec((1, L, toc), lambda n, j: (n, 0, j)))
        args.append(residual)
        kernel = functools.partial(_conv3x3_res_kernel, WP=WP, M=M, act=act)
    else:
        kernel = functools.partial(_conv3x3_kernel, WP=WP, M=M, act=act)

    flops = 2 * N * M * 9 * C * OC
    bytes_accessed = int(sum(int(a.size) * a.dtype.itemsize for a in args)
                         + N * L * OC * 2)
    return pl.pallas_call(
        kernel,
        out_shape=jax.ShapeDtypeStruct((N, L, OC), ACT_DTYPE),
        grid=(N, n_oc),
        in_specs=in_specs,
        out_specs=pl.BlockSpec((1, L, toc), lambda n, j: (n, 0, j)),
        compiler_params=pltpu.CompilerParams(
            dimension_semantics=("parallel", "parallel"),
            vmem_limit_bytes=VMEM_LIMIT),
        cost_estimate=pl.CostEstimate(flops=int(flops), transcendentals=0,
                                      bytes_accessed=bytes_accessed),
    )(*args)


def gemm_bias_act(x, w, bias, act="none", out_dtype=ACT_DTYPE):
    """act(x @ w + bias) with bf16 operands, M-tiled over the MXU."""
    M, K = x.shape
    _, Nc = w.shape
    Mp = _round_up(M, TM_GEMM)
    if Mp != M:
        x = jnp.pad(x, ((0, Mp - M), (0, 0)))
    bytes_accessed = int(int(x.size) * x.dtype.itemsize
                         + int(w.size) * w.dtype.itemsize + Mp * Nc * 2)
    out = pl.pallas_call(
        functools.partial(_gemm_bias_act_kernel, act=act),
        out_shape=jax.ShapeDtypeStruct((Mp, Nc), out_dtype),
        grid=(Mp // TM_GEMM,),
        in_specs=[pl.BlockSpec((TM_GEMM, K), lambda i: (i, 0)),
                  pl.BlockSpec((K, Nc), lambda i: (0, 0)),
                  pl.BlockSpec((1, Nc), lambda i: (0, 0))],
        out_specs=pl.BlockSpec((TM_GEMM, Nc), lambda i: (i, 0)),
        compiler_params=pltpu.CompilerParams(
            dimension_semantics=("parallel",),
            vmem_limit_bytes=VMEM_LIMIT),
        cost_estimate=pl.CostEstimate(flops=int(2 * Mp * K * Nc),
                                      transcendentals=0,
                                      bytes_accessed=bytes_accessed),
    )(x, w, bias)
    return out[:M]


def conv_s2_im2col(x_nhwc, w2d, bias, ksize, stride, pad, act):
    """Strided conv (stem / stage entry / downsample) via im2col + bf16 GEMM."""
    # TODO(synk): the 7 stride-2 convs still stage im2col patches through HBM in
    # plain JAX (<=~2.25x duplication since their outputs are 4x smaller); a
    # phase-decomposed direct kernel would remove this last staging copy.
    N, H, W, C = x_nhwc.shape
    OC = w2d.shape[1]
    OH = (H + 2 * pad - ksize) // stride + 1
    OW = (W + 2 * pad - ksize) // stride + 1
    xp = jnp.pad(x_nhwc, ((0, 0), (pad, pad), (pad, pad), (0, 0))).astype(ACT_DTYPE)
    cols = [xp[:, i:i + OH * stride:stride, j:j + OW * stride:stride, :]
            for i in range(ksize) for j in range(ksize)]
    patches = jnp.stack(cols, axis=3).reshape(N * OH * OW, ksize * ksize * C)
    out2d = gemm_bias_act(patches, w2d, bias, act=act)
    return out2d.reshape(N, OH, OW, OC)


def maxpool_3x3_s2_p1(x_nhwc):
    """MaxPool2d(kernel=3, stride=2, padding=1), tiled Pallas max-reduce."""
    N, H, W, C = x_nhwc.shape
    OH = (H + 2 - 3) // 2 + 1
    OW = (W + 2 - 3) // 2 + 1
    xp = jnp.pad(x_nhwc, ((0, 0), (1, 1), (1, 1), (0, 0)),
                 constant_values=-jnp.inf)
    cols = [xp[:, i:i + OH * 2:2, j:j + OW * 2:2, :]
            for i in range(3) for j in range(3)]
    M = N * OH * OW
    Mp = _round_up(M, POOL_TM)
    stacked = jnp.stack(cols, axis=0).reshape(9, M, C)
    if Mp != M:
        stacked = jnp.pad(stacked, ((0, 0), (0, Mp - M), (0, 0)),
                          constant_values=-jnp.inf)
    out = pl.pallas_call(
        _maxpool9_kernel,
        out_shape=jax.ShapeDtypeStruct((Mp, C), x_nhwc.dtype),
        grid=(Mp // POOL_TM,),
        in_specs=[pl.BlockSpec((9, POOL_TM, C), lambda i: (0, i, 0))],
        out_specs=pl.BlockSpec((POOL_TM, C), lambda i: (i, 0)),
        compiler_params=pltpu.CompilerParams(
            dimension_semantics=("parallel",),
            vmem_limit_bytes=VMEM_LIMIT),
    )(stacked)
    return out[:M].reshape(N, OH, OW, C)


# ============================================================================
# ResNet-34 parameters (deterministic synthetic init, torchvision shapes),
# pre-transformed once into kernel-ready layout (transposed, BN-scale folded,
# bf16) so the forward pass does no per-call weight reshuffling.
# ============================================================================
_LAYER_CFG = ((64, 3, 1), (128, 4, 2), (256, 6, 2), (512, 3, 2))  # (ch, blocks, stride)


def init_resnet34_params(key, num_classes=2):
    keys = iter(jax.random.split(key, 256))

    def conv_w(oc, ic, k):
        fan_in = ic * k * k
        return (jax.random.normal(next(keys), (oc, ic, k, k), jnp.float32)
                * (2.0 / fan_in) ** 0.5)

    def bn(c):
        # eval-mode BatchNorm folded into per-channel (scale, shift)
        gamma = jax.random.uniform(next(keys), (c,), jnp.float32, 0.5, 1.5)
        beta = jax.random.normal(next(keys), (c,), jnp.float32) * 0.1
        mean = jax.random.normal(next(keys), (c,), jnp.float32) * 0.1
        var = jax.random.uniform(next(keys), (c,), jnp.float32, 0.5, 1.5)
        scale = gamma * jax.lax.rsqrt(var + 1e-5)
        shift = beta - mean * scale
        return scale, shift

    def fold_gemm(w_oihw, scale, shift):
        # (O,I,KH,KW) -> (KH*KW*I, O) with BN scale folded into columns, bf16.
        O, I, KH, KW = w_oihw.shape
        w2d = jnp.transpose(w_oihw, (2, 3, 1, 0)).reshape(KH * KW * I, O)
        w2d = w2d * scale[None, :]
        return w2d.astype(jnp.bfloat16), shift.reshape(1, O).astype(jnp.float32)

    def fold_taps(w_oihw, scale, shift):
        # (O,I,3,3) -> (9, I, O) per-tap layout, BN scale folded, bf16.
        O, I, KH, KW = w_oihw.shape
        wt = jnp.transpose(w_oihw, (2, 3, 1, 0)).reshape(KH * KW, I, O)
        wt = wt * scale[None, None, :]
        return wt.astype(jnp.bfloat16), shift.reshape(1, O).astype(jnp.float32)

    params = {}
    params["stem_w"], params["stem_b"] = fold_gemm(conv_w(64, 3, 7), *bn(64))

    layers = []
    in_ch = 64
    for out_ch, n_blocks, layer_stride in _LAYER_CFG:
        layer = []
        for b in range(n_blocks):
            stride = layer_stride if b == 0 else 1
            blk = {"stride": stride}
            w1, bn1 = conv_w(out_ch, in_ch, 3), bn(out_ch)
            w2, bn2 = conv_w(out_ch, out_ch, 3), bn(out_ch)
            if stride != 1:
                blk["conv1_gemm"] = fold_gemm(w1, *bn1)
            else:
                blk["conv1_taps"] = fold_taps(w1, *bn1)
            blk["conv2_taps"] = fold_taps(w2, *bn2)
            if stride != 1 or in_ch != out_ch:
                blk["ds_gemm"] = fold_gemm(conv_w(out_ch, in_ch, 1), *bn(out_ch))
            layer.append(blk)
            in_ch = out_ch
        layers.append(layer)
    params["layers"] = layers

    num_features = 512
    fc_out = 1 if num_classes == 2 else num_classes
    params["fc_w"] = (jax.random.normal(next(keys), (fc_out, num_features), jnp.float32)
                      * (1.0 / num_features) ** 0.5)
    params["fc_b"] = jnp.zeros((fc_out,), jnp.float32)
    params["num_classes"] = num_classes
    return params


# ============================================================================
# Forward pass (matches torchvision resnet34 + custom binary head, eval mode)
# ============================================================================
def resnet34_forward(params, x_nchw):
    x = jnp.transpose(x_nchw, (0, 2, 3, 1)).astype(jnp.float32)  # NCHW -> NHWC

    # stem: conv7x7/2 + BN + ReLU (im2col GEMM), then maxpool 3x3/2
    x = conv_s2_im2col(x, params["stem_w"], params["stem_b"],
                       ksize=7, stride=2, pad=3, act="relu")
    x = maxpool_3x3_s2_p1(x)

    # residual stages: activations kept in padded-flat bf16 layout end-to-end
    curH, curW = x.shape[1], x.shape[2]
    xf = to_padded_flat(x)
    mask = make_col_mask(curH, curW)

    for layer in params["layers"]:
        for blk in layer:
            if blk["stride"] != 1:
                # stage entry: strided conv1 + strided 1x1 downsample (GEMM path)
                x_nhwc = from_padded_flat(xf, curH, curW)
                w1, b1 = blk["conv1_gemm"]
                y = conv_s2_im2col(x_nhwc, w1, b1, ksize=3, stride=2, pad=1,
                                   act="relu")
                wd, bd = blk["ds_gemm"]
                ident = conv_s2_im2col(x_nhwc, wd, bd, ksize=1, stride=2, pad=0,
                                       act="none")
                curH, curW = y.shape[1], y.shape[2]
                mask = make_col_mask(curH, curW)
                yf = to_padded_flat(y)
                identf = to_padded_flat(ident)
            else:
                identf = xf
                w1, b1 = blk["conv1_taps"]
                yf = conv3x3_s1(xf, w1, b1, mask, curH, curW, act="relu")
            w2, b2 = blk["conv2_taps"]
            xf = conv3x3_s1(yf, w2, b2, mask, curH, curW, act="relu",
                            residual=identf)

    # adaptive average pool to 1x1: borders/tail of the padded-flat layout are
    # exact zeros, so a plain sum over the flat axis / (H*W) is the mean.
    pooled = xf.astype(jnp.float32).sum(axis=1) / float(curH * curW)  # (N, 512)

    # tiny FC head in plain XLA (padding (2,512)x(512,1) to MXU tiles is waste)
    logits = pooled @ params["fc_w"].T.astype(jnp.float32) + params["fc_b"]
    if params["num_classes"] == 2:
        return jax.nn.sigmoid(logits)   # nn.Sequential(Linear(512,1), Sigmoid)
    return logits


if __name__ == "__main__":
    key = jax.random.PRNGKey(0)
    pkey, xkey = jax.random.split(key)
    params = init_resnet34_params(pkey, num_classes=2)
    # small but structure-consistent input (ImageNet-style 3-channel image)
    x = jax.random.normal(xkey, (2, 3, 64, 64), jnp.float32)
    out = resnet34_forward(params, x)
    out = jax.block_until_ready(out)
    assert out.shape == (2, 1), out.shape
    assert bool(jnp.all((out >= 0.0) & (out <= 1.0))), "sigmoid output out of range"
    print("KERNEL_OK")
</pallas_src>

<mosaic_0001>
module attributes {stable_mosaic.version = 11 : i64} {
  func.func @_gemm_bias_act_kernel(%arg0: i32, %arg1: memref<256x147xbf16, #tpu.memory_space<vmem>>, %arg2: memref<147x64xbf16, #tpu.memory_space<vmem>>, %arg3: memref<1x64xf32, #tpu.memory_space<vmem>>, %arg4: memref<256x64xbf16, #tpu.memory_space<vmem>>) attributes {dimension_semantics = [#tpu.dimension_semantics<parallel>], iteration_bounds = array<i64: 8>, scalar_prefetch = 0 : i64, scratch_operands = 0 : i64, tpu.core_type = #tpu.core_type<tc>, window_params = [{transform_indices = @transform_0, window_bounds = array<i64: 256, 147>}, {pipeline_mode = #tpu.pipeline_mode<synchronous>, transform_indices = @transform_1, window_bounds = array<i64: 147, 64>}, {pipeline_mode = #tpu.pipeline_mode<synchronous>, transform_indices = @transform_2, window_bounds = array<i64: 1, 64>}, {transform_indices = @transform_3, window_bounds = array<i64: 256, 64>}]} {
    %c0 = arith.constant 0 : index
    %c0_0 = arith.constant 0 : index
    %0 = vector.load %arg1[%c0, %c0_0] : memref<256x147xbf16, #tpu.memory_space<vmem>>, vector<256x147xbf16>
    %c0_1 = arith.constant 0 : index
    %c0_2 = arith.constant 0 : index
    %1 = vector.load %arg2[%c0_1, %c0_2] : memref<147x64xbf16, #tpu.memory_space<vmem>>, vector<147x64xbf16>
    %cst = arith.constant dense<0.000000e+00> : vector<256x64xf32>
    %2 = tpu.matmul %0, %1, %cst {dimension_numbers = #tpu.dot_dimension_numbers<[1], [0], [0], [1], [0, 0, 1, 1], [], []>} : vector<256x147xbf16>, vector<147x64xbf16>, vector<256x64xf32> -> vector<256x64xf32>
    %c0_3 = arith.constant 0 : index
    %c0_4 = arith.constant 0 : index
    %3 = vector.load %arg3[%c0_3, %c0_4] : memref<1x64xf32, #tpu.memory_space<vmem>>, vector<1x64xf32>
    %4 = vector.broadcast %3 : vector<1x64xf32> to vector<256x64xf32>
    %5 = arith.addf %2, %4 : vector<256x64xf32>
    %cst_5 = arith.constant 0.000000e+00 : f32
    %6 = vector.broadcast %cst_5 : f32 to vector<256x64xf32>
    %7 = arith.maximumf %5, %6 : vector<256x64xf32>
    %8 = arith.truncf %7 : vector<256x64xf32> to vector<256x64xbf16>
    %c0_6 = arith.constant 0 : index
    %c0_7 = arith.constant 0 : index
    %9 = vector.load %arg4[%c0_6, %c0_7] : memref<256x64xbf16, #tpu.memory_space<vmem>>, vector<256x64xbf16>
    tpu.vector_store %arg4[%c0_6, %c0_7], %8 {strides = array<i32>} : memref<256x64xbf16, #tpu.memory_space<vmem>>, vector<256x64xbf16>,
    return
  }
  func.func @transform_0(%arg0: i32) -> (i32, i32) {
    %c0_i32 = arith.constant 0 : i32
    %c0_i32_0 = arith.constant 0 : i32
    return %arg0, %c0_i32 : i32, i32
  }
  func.func @transform_1(%arg0: i32) -> (i32, i32) {
    %c0_i32 = arith.constant 0 : i32
    %c0_i32_0 = arith.constant 0 : i32
    %c0_i32_1 = arith.constant 0 : i32
    return %c0_i32, %c0_i32_0 : i32, i32
  }
  func.func @transform_2(%arg0: i32) -> (i32, i32) {
    %c0_i32 = arith.constant 0 : i32
    %c0_i32_0 = arith.constant 0 : i32
    %c0_i32_1 = arith.constant 0 : i32
    return %c0_i32, %c0_i32_0 : i32, i32
  }
  func.func @transform_3(%arg0: i32) -> (i32, i32) {
    %c0_i32 = arith.constant 0 : i32
    %c0_i32_0 = arith.constant 0 : i32
    return %arg0, %c0_i32 : i32, i32
  }
}

</mosaic_0001>

<llo_original>
// kernel: tpu_custom_call.1
$region0: #{tpu_custom_call.1}
  #allocation0 [shape = 'u32[]', space=smem, size = 0x4, offset = 0x4, fixed_abs, tag = 'smem constant byte address 0x4 - core index']
  #allocation1 [shape = 'u32[144,128]{1,0:T(1,128)}', space=vmem, size = 0x12000, scoped, tag = 'internal scratch']
  %s0 = inlined_call_operand.vmem [shape: bf16[2048,147], index: 0, kind: input, shape index: {}]
  %s1 = inlined_call_operand.vmem [shape: bf16[147,64], index: 1, kind: input, shape index: {}]
  %s2 = inlined_call_operand.vmem [shape: f32[1,64], index: 2, kind: input, shape index: {}]
  %s3 = inlined_call_operand.vmem [shape: bf16[2048,64], index: 3, kind: output, shape index: {}]
  %s4 = sld [smem:[#allocation0]]
  $region45: #{tpu_custom_call.1} parent=0
    _
  %s6 = ssub.s32 1, %s4
  %s7 = scalar_select 0, %s6, %s4
  loop: start=0, step=1, limit=10
  $region2: #{tpu_custom_call.1} parent=0 // loop_pre_header
    _
  $region3: #{tpu_custom_call.1} parent=0 // loop_header
    %s9 = sphi 0, %s13
    %p10 = scmp.ge.s32.totalorder %s9, 10
    %s19 = sphi 0, %s21
    %s22 = sphi 0, %s19
    %s23 = sphi 0, %s22
    %s39 = sphi 0, %s23
    %s43 = sphi 0, %s43
    %s45 = sphi 0, %s43
    %s46 = sphi 0, %s45
    %s60 = sphi 0, %s46
    %s64 = sphi 0, %s64
    %s66 = sphi 0, %s64
    %s67 = sphi 0, %s66
    %s81 = sphi 0, %s67
    %s87 = sphi 0, %s89
    %s90 = sphi 0, %s87
    %s91 = sphi 0, %s90
    %s107 = sphi 0, %s91
  $region4: #{tpu_custom_call.1} parent=0 // loop_header_branch
    %12 = sbr.rel (%p10) target = $region8
  $region5: #{tpu_custom_call.1} parent=0 // loop_body
    %s14 = ssub.s32 %s9, 1
    %s15 = ssub.s32 %s9, 2
    %s16 = sadd.s32 %s9, 1
    %s17 = ssub.s32 %s9, %s16
    %p18 = scmp.eq.s32.totalorder %s17, 0
    %s20 = sadd.s32 %s19, 1
    %s21 = scalar_select %p18, %s19, %s20
    %p24 = pneg %p18
    %p25 = scmp.eq.s32.totalorder %s9, 7
    %p26 = por %p24, %p25
    %p27 = scmp.ne.s32.totalorder %s19, %s22
    %p28 = scmp.eq.s32.totalorder %s9, 0
    %p29 = por %p27, %p28
    %p30 = scmp.ne.s32.totalorder %s19, %s22
    %p31 = scmp.eq.s32.totalorder %s14, 7
    %p32 = por %p30, %p31
    %p33 = scmp.ne.s32.totalorder %s22, %s23
    %p34 = scmp.eq.s32.totalorder %s14, 0
    %p35 = por %p33, %p34
    %p36 = scmp.ne.s32.totalorder %s22, %s23
    %p37 = scmp.eq.s32.totalorder %s15, 7
    %p38 = por %p36, %p37
    %p40 = scmp.ne.s32.totalorder %s23, %s39
    %p41 = scmp.eq.s32.totalorder %s15, 0
    %p42 = por %p40, %p41
    %s44 = sadd.s32 %s43, 1
    %p47 = scmp.eq.s32.totalorder %s9, 7
    %p48 = scmp.ne.s32.totalorder %s43, %s45
    %p49 = scmp.eq.s32.totalorder %s9, 0
    %p50 = por %p48, %p49
    %p51 = scmp.ne.s32.totalorder %s43, %s45
    %p52 = scmp.eq.s32.totalorder %s14, 7
    %p53 = por %p51, %p52
    %p54 = scmp.ne.s32.totalorder %s45, %s46
    %p55 = scmp.eq.s32.totalorder %s14, 0
    %p56 = por %p54, %p55
    %p57 = scmp.ne.s32.totalorder %s45, %s46
    %p58 = scmp.eq.s32.totalorder %s15, 7
    %p59 = por %p57, %p58
    %p61 = scmp.ne.s32.totalorder %s46, %s60
    %p62 = scmp.eq.s32.totalorder %s15, 0
    %p63 = por %p61, %p62
    %s65 = sadd.s32 %s64, 1
    %p68 = scmp.eq.s32.totalorder %s9, 7
    %p69 = scmp.ne.s32.totalorder %s64, %s66
    %p70 = scmp.eq.s32.totalorder %s9, 0
    %p71 = por %p69, %p70
    %p72 = scmp.ne.s32.totalorder %s64, %s66
    %p73 = scmp.eq.s32.totalorder %s14, 7
    %p74 = por %p72, %p73
    %p75 = scmp.ne.s32.totalorder %s66, %s67
    %p76 = scmp.eq.s32.totalorder %s14, 0
    %p77 = por %p75, %p76
    %p78 = scmp.ne.s32.totalorder %s66, %s67
    %p79 = scmp.eq.s32.totalorder %s15, 7
    %p80 = por %p78, %p79
    %p82 = scmp.ne.s32.totalorder %s67, %s81
    %p83 = scmp.eq.s32.totalorder %s15, 0
    %p84 = por %p82, %p83
    %s85 = ssub.s32 %s9, %s16
    %p86 = scmp.eq.s32.totalorder %s85, 0
    %s88 = sadd.s32 %s87, 1
    %s89 = scalar_select %p86, %s87, %s88
    %p92 = pneg %p86
    %p93 = scmp.eq.s32.totalorder %s9, 7
    %p94 = por %p92, %p93
    %p95 = scmp.ne.s32.totalorder %s87, %s90
    %p96 = scmp.eq.s32.totalorder %s9, 0
    %p97 = por %p95, %p96
    %p98 = scmp.ne.s32.totalorder %s87, %s90
    %p99 = scmp.eq.s32.totalorder %s14, 7
    %p100 = por %p98, %p99
    %p101 = scmp.ne.s32.totalorder %s90, %s91
    %p102 = scmp.eq.s32.totalorder %s14, 0
    %p103 = por %p101, %p102
    %p104 = scmp.ne.s32.totalorder %s90, %s91
    %p105 = scmp.eq.s32.totalorder %s15, 7
    %p106 = por %p104, %p105
    %p108 = scmp.ne.s32.totalorder %s91, %s107
    %p109 = scmp.eq.s32.totalorder %s15, 0
    %p110 = por %p108, %p109
    %p111 = scmp.le.s32.totalorder 1, %s9
    %p112 = scmp.lt.s32.totalorder %s9, 9
    %p113 = pnand %p111, %p112
    %p114 = pneg %p113
    // Predicated region
    $region9: #{tpu_custom_call.1} parent=5 // pred_check
      _
    $region10: #{tpu_custom_call.1} parent=5 // pred_check_branch
      %116 = sbr.rel (%p113) target = $region12
    $region11: #{tpu_custom_call.1} parent=5 // pred_region
      %s117 = ssub.s32 %s9, 1
      // Predicated region
      $region13: #{tpu_custom_call.1} parent=11 // pred_check
        %p118 = pneg %p56
      $region14: #{tpu_custom_call.1} parent=11 // pred_check_branch
        %120 = sbr.rel (%p118) target = $region16
      $region15: #{tpu_custom_call.1} parent=11 // pred_region
        _
      $region16: #{tpu_custom_call.1} parent=11 // pred_fallthru
        _
      // Predicated region
      $region17: #{tpu_custom_call.1} parent=11 // pred_check
        %p121 = pneg %p77
      $region18: #{tpu_custom_call.1} parent=11 // pred_check_branch
        %123 = sbr.rel (%p121) target = $region20
      $region19: #{tpu_custom_call.1} parent=11 // pred_region
        _
      $region20: #{tpu_custom_call.1} parent=11 // pred_fallthru
        _
    $region12: #{tpu_custom_call.1} parent=5 // pred_fallthru
      _
    %p124 = scmp.lt.s32.totalorder %s9, 8
    // Predicated region
    $region21: #{tpu_custom_call.1} parent=5 // pred_check
      %p125 = pneg %p124
    $region22: #{tpu_custom_call.1} parent=5 // pred_check_branch
      %127 = sbr.rel (%p125) target = $region24
    $region23: #{tpu_custom_call.1} parent=5 // pred_region
      // Predicated region
      $region25: #{tpu_custom_call.1} parent=23 // pred_check
        %p128 = pneg %p29
      $region26: #{tpu_custom_call.1} parent=23 // pred_check_branch
        %130 = sbr.rel (%p128) target = $region28
      $region27: #{tpu_custom_call.1} parent=23 // pred_region
        %s131 = smul.u32 32, %s9
        %p132 = scmp.lt.s32.totalorder %s131, 255
        %s133 = scalar_select %p132, %s131, 255
        %s134 = smul.addr %s133, 2
        %s135 = smul.addr %s134, 4
        %s136 = scalar_lea.vmem %s0, %s135
        %s137 = smul.u32 32, %s9
      $region28: #{tpu_custom_call.1} parent=23 // pred_fallthru
        _
    $region24: #{tpu_custom_call.1} parent=5 // pred_fallthru
      _
    %p138 = scmp.le.s32.totalorder 1, %s9
    %p139 = scmp.lt.s32.totalorder %s9, 9
    %p140 = pnand %p138, %p139
    %p141 = pneg %p140
    // Predicated region
    $region29: #{tpu_custom_call.1} parent=5 // pred_check
      _
    $region30: #{tpu_custom_call.1} parent=5 // pred_check_branch
      %143 = sbr.rel (%p140) target = $region32
    $region31: #{tpu_custom_call.1} parent=5 // pred_region
      %s144 = ssub.s32 %s9, 1
      %s145 = smul.u32 32, %s14
      %p146 = scmp.lt.s32.totalorder %s145, 255
      %s147 = scalar_select %p146, %s145, 255
      %s148 = smul.addr %s147, 2
      %s149 = smul.addr %s148, 4
      %s150 = scalar_lea.vmem %s0, %s149
      %p151 = pneg %p35
      %p152 = pneg %p32
      %p153 = pneg %p56
      %p154 = pneg %p53
      %p155 = pneg %p77
      %p156 = pneg %p74
      %p157 = pneg %p103
      %p158 = pneg %p100
      %s159 = smul.u32 32, %s14
      %p160 = scmp.lt.s32.totalorder %s159, 255
      %s161 = scalar_select %p160, %s159, 255
      %s162 = smul.addr %s161, 4
      %s163 = scalar_lea.vmem %s3, %s162
      %s164 = smul.u32 32, %s14
      %p165 = scmp.lt.s32.totalorder %s164, 255
      %s166 = scalar_select %p165, %s164, 255
      %s167 = smul.addr %s166, 2
      %s168 = smul.addr %s167, 4
      %s169 = scalar_lea.vmem %s0, %s168
      %s170 = smul.u32 32, %s14
      %s171 = smul.u32 32, %s14
      %p172 = scmp.lt.s32.totalorder %s171, 255
      %s173 = scalar_select %p172, %s171, 255
      %s174 = smul.addr %s173, 4
      %s175 = scalar_lea.vmem %s3, %s174
      %s176 = smul.u32 32, %s14
      %v178 = vld [vmem:[%s169] sm:$0xff]
      %v179 = vld [vmem:[%s169 + $0x8] sm:$0xff]
      %v180 = vld [vmem:[%s169 + $0x10] sm:$0xff]
      %v181 = vld [vmem:[%s169 + $0x18] sm:$0xff]
      %v182 = vld [vmem:[%s169 + $0x20] sm:$0xff]
      %v183 = vld [vmem:[%s169 + $0x28] sm:$0xff]
      %v184 = vld [vmem:[%s169 + $0x30] sm:$0xff]
      %v185 = vld [vmem:[%s169 + $0x38] sm:$0xff]
      %v186 = vld [vmem:[%s169 + $0x40] sm:$0xff]
      %v187 = vld [vmem:[%s169 + $0x48] sm:$0xff]
      %v188 = vld [vmem:[%s169 + $0x50] sm:$0xff]
      %v189 = vld [vmem:[%s169 + $0x58] sm:$0xff]
      %v190 = vld [vmem:[%s169 + $0x60] sm:$0xff]
      %v191 = vld [vmem:[%s169 + $0x68] sm:$0xff]
      %v192 = vld [vmem:[%s169 + $0x70] sm:$0xff]
      %v193 = vld [vmem:[%s169 + $0x78] sm:$0xff]
      %v194 = vld [vmem:[%s169 + $0x80] sm:$0xff]
      %v195 = vld [vmem:[%s169 + $0x88] sm:$0xff]
      %v196 = vld [vmem:[%s169 + $0x90] sm:$0xff]
      %v197 = vld [vmem:[%s169 + $0x98] sm:$0xff]
      %v198 = vld [vmem:[%s169 + $0xa0] sm:$0xff]
      %v199 = vld [vmem:[%s169 + $0xa8] sm:$0xff]
      %v200 = vld [vmem:[%s169 + $0xb0] sm:$0xff]
      %v201 = vld [vmem:[%s169 + $0xb8] sm:$0xff]
      %v202 = vld [vmem:[%s169 + $0xc0] sm:$0xff]
      %v203 = vld [vmem:[%s169 + $0xc8] sm:$0xff]
      %v204 = vld [vmem:[%s169 + $0xd0] sm:$0xff]
      %v205 = vld [vmem:[%s169 + $0xd8] sm:$0xff]
      %v206 = vld [vmem:[%s169 + $0xe0] sm:$0xff]
      %v207 = vld [vmem:[%s169 + $0xe8] sm:$0xff]
      %v208 = vld [vmem:[%s169 + $0xf0] sm:$0xff]
      %v209 = vld [vmem:[%s169 + $0xf8] sm:$0xff]
      %v210 = vld [vmem:[%s1] sm:$0xf]
      %v211 = vld [vmem:[%s1 + $0x4] sm:$0xf]
      %v212 = vld [vmem:[%s1 + $0x8] sm:$0xf]
      %v213 = vld [vmem:[%s1 + $0xc] sm:$0xf]
      %v214 = vld [vmem:[%s1 + $0x10] sm:$0xf]
      %v215 = vld [vmem:[%s1 + $0x14] sm:$0xf]
      %v216 = vld [vmem:[%s1 + $0x18] sm:$0xf]
      %v217 = vld [vmem:[%s1 + $0x1c] sm:$0xf]
      %v218 = vld [vmem:[%s1 + $0x20] sm:$0xf]
      %v219 = vld [vmem:[%s1 + $0x24] sm:$0xf]
      %v220 = vld [vmem:[%s1 + $0x28] sm:$0xf]
      %v221 = vld [vmem:[%s1 + $0x2c] sm:$0xf]
      %v222 = vld [vmem:[%s1 + $0x30] sm:$0xf]
      %v223 = vld [vmem:[%s1 + $0x34] sm:$0xf]
      %v224 = vld [vmem:[%s1 + $0x38] sm:$0xf]
      %v225 = vld [vmem:[%s1 + $0x3c] sm:$0xf]
      %v226 = vld [vmem:[%s1 + $0x40] sm:$0xf]
      %v227 = vld [vmem:[%s1 + $0x44] sm:$0xf]
      %v228 = vld [vmem:[%s1 + $0x48] sm:$0x3]
      %v229 = vld [vmem:[%s2] sm:$0x1]
      %v231 = vlaneseq
      %v232 = vshrl.u32 %v231, 7
      %v233 = vsub.s32 0, %v232
      %v234 = vrot.slane %v229, %v233
      %v268 = vunpack.c.l.b16 %v178
      %v269 = vunpack.c.h.b16 %v178
      %v270 = vunpack.c.l.b16 %v179
      %v271 = vunpack.c.h.b16 %v179
      %v272 = vunpack.c.l.b16 %v180
      %v273 = vunpack.c.h.b16 %v180
      %v274 = vunpack.c.l.b16 %v181
      %v275 = vunpack.c.h.b16 %v181
      %v276 = vunpack.c.l.b16 %v182
      %v277 = vunpack.c.h.b16 %v182
      %v278 = vunpack.c.l.b16 %v183
      %v279 = vunpack.c.h.b16 %v183
      %v280 = vunpack.c.l.b16 %v184
      %v281 = vunpack.c.h.b16 %v184
      %v282 = vunpack.c.l.b16 %v185
      %v283 = vunpack.c.h.b16 %v185
      %v284 = vunpack.c.l.b16 %v186
      %v285 = vunpack.c.h.b16 %v186
      %v286 = vunpack.c.l.b16 %v187
      %v287 = vunpack.c.h.b16 %v187
      %v288 = vunpack.c.l.b16 %v188
      %v289 = vunpack.c.h.b16 %v188
      %v290 = vunpack.c.l.b16 %v189
      %v291 = vunpack.c.h.b16 %v189
      %v292 = vunpack.c.l.b16 %v190
      %v293 = vunpack.c.h.b16 %v190
      %v294 = vunpack.c.l.b16 %v191
      %v295 = vunpack.c.h.b16 %v191
      %v296 = vunpack.c.l.b16 %v192
      %v297 = vunpack.c.h.b16 %v192
      %v298 = vunpack.c.l.b16 %v193
      %v299 = vunpack.c.h.b16 %v193
      %v300 = vunpack.c.l.b16 %v194
      %v301 = vunpack.c.h.b16 %v194
      %v302 = vunpack.c.l.b16 %v195
      %v303 = vunpack.c.h.b16 %v195
      %v304 = vunpack.c.l.b16 %v196
      %v305 = vunpack.c.h.b16 %v196
      %v306 = vunpack.c.l.b16 %v197
      %v307 = vunpack.c.h.b16 %v197
      %v308 = vunpack.c.l.b16 %v198
      %v309 = vunpack.c.h.b16 %v198
      %v310 = vunpack.c.l.b16 %v199
      %v311 = vunpack.c.h.b16 %v199
      %v312 = vunpack.c.l.b16 %v200
      %v313 = vunpack.c.h.b16 %v200
      %v314 = vunpack.c.l.b16 %v201
      %v315 = vunpack.c.h.b16 %v201
      %v316 = vunpack.c.l.b16 %v202
      %v317 = vunpack.c.h.b16 %v202
      %v318 = vunpack.c.l.b16 %v203
      %v319 = vunpack.c.h.b16 %v203
      %v320 = vunpack.c.l.b16 %v204
      %v321 = vunpack.c.h.b16 %v204
      %v322 = vunpack.c.l.b16 %v205
      %v323 = vunpack.c.h.b16 %v205
      %v324 = vunpack.c.l.b16 %v206
      %v325 = vunpack.c.h.b16 %v206
      %v326 = vunpack.c.l.b16 %v207
      %v327 = vunpack.c.h.b16 %v207
      %v328 = vunpack.c.l.b16 %v208
      %v329 = vunpack.c.h.b16 %v208
      %v330 = vunpack.c.l.b16 %v209
      %v331 = vunpack.c.h.b16 %v209
      %v332 = vpack.c.b16 %v270, %v268
      %v333 = vpack.c.b16 %v271, %v269
      %v334 = vpack.c.b16 %v274, %v272
      %v335 = vpack.c.b16 %v275, %v273
      %v336 = vpack.c.b16 %v278, %v276
      %v337 = vpack.c.b16 %v279, %v277
      %v338 = vpack.c.b16 %v282, %v280
      %v339 = vpack.c.b16 %v283, %v281
      %v340 = vpack.c.b16 %v286, %v284
      %v341 = vpack.c.b16 %v287, %v285
      %v342 = vpack.c.b16 %v290, %v288
      %v343 = vpack.c.b16 %v291, %v289
      %v344 = vpack.c.b16 %v294, %v292
      %v345 = vpack.c.b16 %v295, %v293
      %v346 = vpack.c.b16 %v298, %v296
      %v347 = vpack.c.b16 %v299, %v297
      %v348 = vpack.c.b16 %v302, %v300
      %v349 = vpack.c.b16 %v303, %v301
      %v350 = vpack.c.b16 %v306, %v304
      %v351 = vpack.c.b16 %v307, %v305
      %v352 = vpack.c.b16 %v310, %v308
      %v353 = vpack.c.b16 %v311, %v309
      %v354 = vpack.c.b16 %v314, %v312
      %v355 = vpack.c.b16 %v315, %v313
      %v356 = vpack.c.b16 %v318, %v316
      %v357 = vpack.c.b16 %v319, %v317
      %v358 = vpack.c.b16 %v322, %v320
      %v359 = vpack.c.b16 %v323, %v321
      %v360 = vpack.c.b16 %v326, %v324
      %v361 = vpack.c.b16 %v327, %v325
      %v362 = vpack.c.b16 %v330, %v328
      %v363 = vpack.c.b16 %v331, %v329
      %v399 = vunpack.c.l.b16 %v210
      %v400 = vunpack.c.l.b16 %v211
      %v401 = vunpack.c.l.b16 %v212
      %v402 = vunpack.c.l.b16 %v213
      %v403 = vunpack.c.l.b16 %v214
      %v404 = vunpack.c.l.b16 %v215
      %v405 = vunpack.c.l.b16 %v216
      %v406 = vunpack.c.l.b16 %v217
      %v407 = vunpack.c.l.b16 %v218
      %v408 = vunpack.c.l.b16 %v219
      %v409 = vunpack.c.l.b16 %v220
      %v410 = vunpack.c.l.b16 %v221
      %v411 = vunpack.c.l.b16 %v222
      %v412 = vunpack.c.l.b16 %v223
      %v413 = vunpack.c.l.b16 %v224
      %v414 = vunpack.c.l.b16 %v225
      %v415 = vunpack.c.l.b16 %v226
      %v416 = vunpack.c.l.b16 %v227
      %v417 = vunpack.c.l.b16 %v228
      %v418 = vpack.c.b16 %v400, %v399
      %v419 = vpack.c.b16 %v402, %v401
      %v420 = vpack.c.b16 %v404, %v403
      %v421 = vpack.c.b16 %v406, %v405
      %v422 = vpack.c.b16 %v408, %v407
      %v423 = vpack.c.b16 %v410, %v409
      %v424 = vpack.c.b16 %v412, %v411
      %v425 = vpack.c.b16 %v414, %v413
      %v426 = vpack.c.b16 %v416, %v415
      %v427 = vpack.c.b16 %v417, %v417
      %vm437 = vcmask 154624
      %v439 = vsel %vm437, %v333, 0
      %v442 = vsel %vm437, %v335, 0
      %v445 = vsel %vm437, %v337, 0
      %v448 = vsel %vm437, %v339, 0
      %v451 = vsel %vm437, %v341, 0
      %v454 = vsel %vm437, %v343, 0
      %v457 = vsel %vm437, %v345, 0
      %v460 = vsel %vm437, %v347, 0
      %v463 = vsel %vm437, %v349, 0
      %v466 = vsel %vm437, %v351, 0
      %v469 = vsel %vm437, %v353, 0
      %v472 = vsel %vm437, %v355, 0
      %v475 = vsel %vm437, %v357, 0
      %v478 = vsel %vm437, %v359, 0
      %v481 = vsel %vm437, %v361, 0
      %v484 = vsel %vm437, %v363, 0
      %vm486 = vcmask 1040384
      %vm487 = vcmask 1041408
      %v488 = vsel %vm486, 4294967295, 65535
      %v489 = vsel %vm487, %v488, 0
      %v491 = vand.u32 %v427, %v489
      %493 = vmatprep.subr.bf16.mxu0 0
      %494 = vmatpush1.bf16.msra.mxu0 %v425
      %495 = vmatprep.subr.bf16.mxu0 0
      %496 = vmatpush1.bf16.msra.mxu0 %v424
      %497 = vmatprep.subr.bf16.mxu0 0
      %498 = vmatpush1.bf16.msra.mxu0 %v423
      %499 = vmatprep.subr.bf16.mxu0 0
      %500 = vmatpush1.bf16.msra.mxu0 %v422
      %501 = vmatprep.subr.bf16.mxu0 0
      %502 = vmatpush1.bf16.msra.mxu0 %v421
      %503 = vmatprep.subr.bf16.mxu0 0
      %504 = vmatpush1.bf16.msra.mxu0 %v420
      %505 = vmatprep.subr.bf16.mxu0 0
      %506 = vmatpush1.bf16.msra.mxu0 %v419
      %507 = vmatprep.subr.bf16.mxu0 0
      %508 = vmatpush1.bf16.msra.mxu0 %v418
      %509 = vmatprep.subr.bf16.mxu0 0
      %510 = vmatpush2.bf16.msra.mxu0 0
      %511 = vmatprep.subr.bf16.mxu0 0
      %512 = vmatpush2.bf16.msra.mxu0 0
      %513 = vmatprep.subr.bf16.mxu0 0
      %514 = vmatpush2.bf16.msra.mxu0 0
      %515 = vmatprep.subr.bf16.mxu0 0
      %516 = vmatpush2.bf16.msra.mxu0 0
      %517 = vmatprep.subr.bf16.mxu0 0
      %518 = vmatpush2.bf16.msra.mxu0 0
      %519 = vmatprep.subr.bf16.mxu0 0
      %520 = vmatpush2.bf16.msra.mxu0 0
      %521 = vmatprep.subr.bf16.mxu0 0
      %522 = vmatpush2.bf16.msra.mxu0 %v491
      %523 = vmatprep.subr.bf16.mxu0 0
      %524 = vmatpush2.bf16.msra.mxu0 %v426
      %525 = vmatprep.mubr.bf16.mxu0 %v439
      %526 = vmatmul.mubr.bf16.gmra.mxu0 %v332
      %v527 = vpop.f32.mrf.mxu0
      %v528 = vadd.f32 %v234, %v527
      %v529 = vpop.f32.mrf.mxu0
      %v530 = vpop.f32.mrf.mxu0
      %v531 = vadd.f32 %v234, %v530
      %v532 = vpop.f32.mrf.mxu0
      %533 = vmatprep.mubr.bf16.mxu0 %v442
      %534 = vmatmul.mubr.bf16.gmra.mxu0 %v334
      %v535 = vpop.f32.mrf.mxu0
      %v536 = vadd.f32 %v234, %v535
      %v537 = vpop.f32.mrf.mxu0
      %v538 = vpop.f32.mrf.mxu0
      %v539 = vadd.f32 %v234, %v538
      %v540 = vpop.f32.mrf.mxu0
      %541 = vmatprep.mubr.bf16.mxu0 %v445
      %542 = vmatmul.mubr.bf16.gmra.mxu0 %v336
      %v543 = vpop.f32.mrf.mxu0
      %v544 = vadd.f32 %v234, %v543
      %v545 = vpop.f32.mrf.mxu0
      %v546 = vpop.f32.mrf.mxu0
      %v547 = vadd.f32 %v234, %v546
      %v548 = vpop.f32.mrf.mxu0
      %549 = vmatprep.mubr.bf16.mxu0 %v448
      %550 = vmatmul.mubr.bf16.gmra.mxu0 %v338
      %v551 = vpop.f32.mrf.mxu0
      %v552 = vadd.f32 %v234, %v551
      %v553 = vpop.f32.mrf.mxu0
      %v554 = vpop.f32.mrf.mxu0
      %v555 = vadd.f32 %v234, %v554
      %v556 = vpop.f32.mrf.mxu0
      %557 = vmatprep.mubr.bf16.mxu0 %v451
      %558 = vmatmul.mubr.bf16.gmra.mxu0 %v340
      %v559 = vpop.f32.mrf.mxu0
      %v560 = vadd.f32 %v234, %v559
      %v561 = vpop.f32.mrf.mxu0
      %v562 = vpop.f32.mrf.mxu0
      %v563 = vadd.f32 %v234, %v562
      %v564 = vpop.f32.mrf.mxu0
      %565 = vmatprep.mubr.bf16.mxu0 %v454
      %566 = vmatmul.mubr.bf16.gmra.mxu0 %v342
      %v567 = vpop.f32.mrf.mxu0
      %v568 = vadd.f32 %v234, %v567
      %v569 = vpop.f32.mrf.mxu0
      %v570 = vpop.f32.mrf.mxu0
      %v571 = vadd.f32 %v234, %v570
      %v572 = vpop.f32.mrf.mxu0
      %573 = vmatprep.mubr.bf16.mxu0 %v457
      %574 = vmatmul.mubr.bf16.gmra.mxu0 %v344
      %v575 = vpop.f32.mrf.mxu0
      %v576 = vadd.f32 %v234, %v575
      %v577 = vpop.f32.mrf.mxu0
      %v578 = vpop.f32.mrf.mxu0
      %v579 = vadd.f32 %v234, %v578
      %v580 = vpop.f32.mrf.mxu0
      %581 = vmatprep.mubr.bf16.mxu0 %v460
      %582 = vmatmul.mubr.bf16.gmra.mxu0 %v346
      %v583 = vpop.f32.mrf.mxu0
      %v584 = vadd.f32 %v234, %v583
      %v585 = vpop.f32.mrf.mxu0
      %v586 = vpop.f32.mrf.mxu0
      %v587 = vadd.f32 %v234, %v586
      %v588 = vpop.f32.mrf.mxu0
      %589 = vmatprep.mubr.bf16.mxu0 %v463
      %590 = vmatmul.mubr.bf16.gmra.mxu0 %v348
      %v591 = vpop.f32.mrf.mxu0
      %v592 = vadd.f32 %v234, %v591
      %v593 = vpop.f32.mrf.mxu0
      %v594 = vpop.f32.mrf.mxu0
      %v595 = vadd.f32 %v234, %v594
      %v596 = vpop.f32.mrf.mxu0
      %597 = vmatprep.mubr.bf16.mxu0 %v466
      %598 = vmatmul.mubr.bf16.gmra.mxu0 %v350
      %v599 = vpop.f32.mrf.mxu0
      %v600 = vadd.f32 %v234, %v599
      %v601 = vpop.f32.mrf.mxu0
      %v602 = vpop.f32.mrf.mxu0
      %v603 = vadd.f32 %v234, %v602
      %v604 = vpop.f32.mrf.mxu0
      %605 = vmatprep.mubr.bf16.mxu0 %v469
      %606 = vmatmul.mubr.bf16.gmra.mxu0 %v352
      %v607 = vpop.f32.mrf.mxu0
      %v608 = vadd.f32 %v234, %v607
      %v609 = vpop.f32.mrf.mxu0
      %v610 = vpop.f32.mrf.mxu0
      %v611 = vadd.f32 %v234, %v610
      %v612 = vpop.f32.mrf.mxu0
      %613 = vmatprep.mubr.bf16.mxu0 %v472
      %614 = vmatmul.mubr.bf16.gmra.mxu0 %v354
      %v615 = vpop.f32.mrf.mxu0
      %v616 = vadd.f32 %v234, %v615
      %v617 = vpop.f32.mrf.mxu0
      %v618 = vpop.f32.mrf.mxu0
      %v619 = vadd.f32 %v234, %v618
      %v620 = vpop.f32.mrf.mxu0
      %621 = vmatprep.mubr.bf16.mxu0 %v475
      %622 = vmatmul.mubr.bf16.gmra.mxu0 %v356
      %v623 = vpop.f32.mrf.mxu0
      %v624 = vadd.f32 %v234, %v623
      %v625 = vpop.f32.mrf.mxu0
      %v626 = vpop.f32.mrf.mxu0
      %v627 = vadd.f32 %v234, %v626
      %v628 = vpop.f32.mrf.mxu0
      %629 = vmatprep.mubr.bf16.mxu0 %v478
      %630 = vmatmul.mubr.bf16.gmra.mxu0 %v358
      %v631 = vpop.f32.mrf.mxu0
      %v632 = vadd.f32 %v234, %v631
      %v633 = vpop.f32.mrf.mxu0
      %v634 = vpop.f32.mrf.mxu0
      %v635 = vadd.f32 %v234, %v634
      %v636 = vpop.f32.mrf.mxu0
      %637 = vmatprep.mubr.bf16.mxu0 %v481
      %638 = vmatmul.mubr.bf16.gmra.mxu0 %v360
      %v639 = vpop.f32.mrf.mxu0
      %v640 = vadd.f32 %v234, %v639
      %v641 = vpop.f32.mrf.mxu0
      %v642 = vpop.f32.mrf.mxu0
      %v643 = vadd.f32 %v234, %v642
      %v644 = vpop.f32.mrf.mxu0
      %645 = vmatprep.mubr.bf16.mxu0 %v484
      %646 = vmatmul.mubr.bf16.gmra.mxu0 %v362
      %v647 = vpop.f32.mrf.mxu0
      %v648 = vadd.f32 %v234, %v647
      %v649 = vpop.f32.mrf.mxu0
      %v650 = vpop.f32.mrf.mxu0
      %v651 = vadd.f32 %v234, %v650
      %v652 = vpop.f32.mrf.mxu0
      %653 = vdwg.mxu0
      %v654 = vmax.f32 %v528, 0.0
      %v655 = vmax.f32 %v531, 0.0
      %v656 = vmax.f32 %v536, 0.0
      %v657 = vmax.f32 %v539, 0.0
      %v658 = vmax.f32 %v544, 0.0
      %v659 = vmax.f32 %v547, 0.0
      %v660 = vmax.f32 %v552, 0.0
      %v661 = vmax.f32 %v555, 0.0
      %v662 = vmax.f32 %v560, 0.0
      %v663 = vmax.f32 %v563, 0.0
      %v664 = vmax.f32 %v568, 0.0
      %v665 = vmax.f32 %v571, 0.0
      %v666 = vmax.f32 %v576, 0.0
      %v667 = vmax.f32 %v579, 0.0
      %v668 = vmax.f32 %v584, 0.0
      %v669 = vmax.f32 %v587, 0.0
      %v670 = vmax.f32 %v592, 0.0
      %v671 = vmax.f32 %v595, 0.0
      %v672 = vmax.f32 %v600, 0.0
      %v673 = vmax.f32 %v603, 0.0
      %v674 = vmax.f32 %v608, 0.0
      %v675 = vmax.f32 %v611, 0.0
      %v676 = vmax.f32 %v616, 0.0
      %v677 = vmax.f32 %v619, 0.0
      %v678 = vmax.f32 %v624, 0.0
      %v679 = vmax.f32 %v627, 0.0
      %v680 = vmax.f32 %v632, 0.0
      %v681 = vmax.f32 %v635, 0.0
      %v682 = vmax.f32 %v640, 0.0
      %v683 = vmax.f32 %v643, 0.0
      %v684 = vmax.f32 %v648, 0.0
      %v685 = vmax.f32 %v651, 0.0
      %v686 = vpack.c.bf16 %v655, %v654
      %v687 = vpack.c.bf16 %v657, %v656
      %v688 = vpack.c.bf16 %v659, %v658
      %v689 = vpack.c.bf16 %v661, %v660
      %v690 = vpack.c.bf16 %v663, %v662
      %v691 = vpack.c.bf16 %v665, %v664
      %v692 = vpack.c.bf16 %v667, %v666
      %v693 = vpack.c.bf16 %v669, %v668
      %v694 = vpack.c.bf16 %v671, %v670
      %v695 = vpack.c.bf16 %v673, %v672
      %v696 = vpack.c.bf16 %v675, %v674
      %v697 = vpack.c.bf16 %v677, %v676
      %v698 = vpack.c.bf16 %v679, %v678
      %v699 = vpack.c.bf16 %v681, %v680
      %v700 = vpack.c.bf16 %v683, %v682
      %v701 = vpack.c.bf16 %v685, %v684
      %v718 = vunpack.c.l.b16 %v686
      %v719 = vunpack.c.h.b16 %v686
      %v720 = vunpack.c.l.b16 %v687
      %v721 = vunpack.c.h.b16 %v687
      %v722 = vunpack.c.l.b16 %v688
      %v723 = vunpack.c.h.b16 %v688
      %v724 = vunpack.c.l.b16 %v689
      %v725 = vunpack.c.h.b16 %v689
      %v726 = vunpack.c.l.b16 %v690
      %v727 = vunpack.c.h.b16 %v690
      %v728 = vunpack.c.l.b16 %v691
      %v729 = vunpack.c.h.b16 %v691
      %v730 = vunpack.c.l.b16 %v692
      %v731 = vunpack.c.h.b16 %v692
      %v732 = vunpack.c.l.b16 %v693
      %v733 = vunpack.c.h.b16 %v693
      %v734 = vunpack.c.l.b16 %v694
      %v735 = vunpack.c.h.b16 %v694
      %v736 = vunpack.c.l.b16 %v695
      %v737 = vunpack.c.h.b16 %v695
      %v738 = vunpack.c.l.b16 %v696
      %v739 = vunpack.c.h.b16 %v696
      %v740 = vunpack.c.l.b16 %v697
      %v741 = vunpack.c.h.b16 %v697
      %v742 = vunpack.c.l.b16 %v698
      %v743 = vunpack.c.h.b16 %v698
      %v744 = vunpack.c.l.b16 %v699
      %v745 = vunpack.c.h.b16 %v699
      %v746 = vunpack.c.l.b16 %v700
      %v747 = vunpack.c.h.b16 %v700
      %v748 = vunpack.c.l.b16 %v701
      %v749 = vunpack.c.h.b16 %v701
      %v750 = vpack.c.b16 %v718, %v718
      %v751 = vpack.c.b16 %v719, %v719
      %v752 = vpack.c.b16 %v720, %v720
      %v753 = vpack.c.b16 %v721, %v721
      %v754 = vpack.c.b16 %v722, %v722
      %v755 = vpack.c.b16 %v723, %v723
      %v756 = vpack.c.b16 %v724, %v724
      %v757 = vpack.c.b16 %v725, %v725
      %v758 = vpack.c.b16 %v726, %v726
      %v759 = vpack.c.b16 %v727, %v727
      %v760 = vpack.c.b16 %v728, %v728
      %v761 = vpack.c.b16 %v729, %v729
      %v762 = vpack.c.b16 %v730, %v730
      %v763 = vpack.c.b16 %v731, %v731
      %v764 = vpack.c.b16 %v732, %v732
      %v765 = vpack.c.b16 %v733, %v733
      %v766 = vpack.c.b16 %v734, %v734
      %v767 = vpack.c.b16 %v735, %v735
      %v768 = vpack.c.b16 %v736, %v736
      %v769 = vpack.c.b16 %v737, %v737
      %v770 = vpack.c.b16 %v738, %v738
      %v771 = vpack.c.b16 %v739, %v739
      %v772 = vpack.c.b16 %v740, %v740
      %v773 = vpack.c.b16 %v741, %v741
      %v774 = vpack.c.b16 %v742, %v742
      %v775 = vpack.c.b16 %v743, %v743
      %v776 = vpack.c.b16 %v744, %v744
      %v777 = vpack.c.b16 %v745, %v745
      %v778 = vpack.c.b16 %v746, %v746
      %v779 = vpack.c.b16 %v747, %v747
      %v780 = vpack.c.b16 %v748, %v748
      %v781 = vpack.c.b16 %v749, %v749
      %vm814 = vcmask 519168
      %815 = vst.msk [vmem:[%s175] sm:$0xf] %vm814, %v750
      %816 = vst.msk [vmem:[%s175 + $0x4] sm:$0xf] %vm814, %v751
      %817 = vst.msk [vmem:[%s175 + $0x8] sm:$0xf] %vm814, %v752
      %818 = vst.msk [vmem:[%s175 + $0xc] sm:$0xf] %vm814, %v753
      %819 = vst.msk [vmem:[%s175 + $0x10] sm:$0xf] %vm814, %v754
      %820 = vst.msk [vmem:[%s175 + $0x14] sm:$0xf] %vm814, %v755
      %821 = vst.msk [vmem:[%s175 + $0x18] sm:$0xf] %vm814, %v756
      %822 = vst.msk [vmem:[%s175 + $0x1c] sm:$0xf] %vm814, %v757
      %823 = vst.msk [vmem:[%s175 + $0x20] sm:$0xf] %vm814, %v758
      %824 = vst.msk [vmem:[%s175 + $0x24] sm:$0xf] %vm814, %v759
      %825 = vst.msk [vmem:[%s175 + $0x28] sm:$0xf] %vm814, %v760
      %826 = vst.msk [vmem:[%s175 + $0x2c] sm:$0xf] %vm814, %v761
      %827 = vst.msk [vmem:[%s175 + $0x30] sm:$0xf] %vm814, %v762
      %828 = vst.msk [vmem:[%s175 + $0x34] sm:$0xf] %vm814, %v763
      %829 = vst.msk [vmem:[%s175 + $0x38] sm:$0xf] %vm814, %v764
      %830 = vst.msk [vmem:[%s175 + $0x3c] sm:$0xf] %vm814, %v765
      %831 = vst.msk [vmem:[%s175 + $0x40] sm:$0xf] %vm814, %v766
      %832 = vst.msk [vmem:[%s175 + $0x44] sm:$0xf] %vm814, %v767
      %833 = vst.msk [vmem:[%s175 + $0x48] sm:$0xf] %vm814, %v768
      %834 = vst.msk [vmem:[%s175 + $0x4c] sm:$0xf] %vm814, %v769
      %835 = vst.msk [vmem:[%s175 + $0x50] sm:$0xf] %vm814, %v770
      %836 = vst.msk [vmem:[%s175 + $0x54] sm:$0xf] %vm814, %v771
      %837 = vst.msk [vmem:[%s175 + $0x58] sm:$0xf] %vm814, %v772
      %838 = vst.msk [vmem:[%s175 + $0x5c] sm:$0xf] %vm814, %v773
      %839 = vst.msk [vmem:[%s175 + $0x60] sm:$0xf] %vm814, %v774
      %840 = vst.msk [vmem:[%s175 + $0x64] sm:$0xf] %vm814, %v775
      %841 = vst.msk [vmem:[%s175 + $0x68] sm:$0xf] %vm814, %v776
      %842 = vst.msk [vmem:[%s175 + $0x6c] sm:$0xf] %vm814, %v777
      %843 = vst.msk [vmem:[%s175 + $0x70] sm:$0xf] %vm814, %v778
      %844 = vst.msk [vmem:[%s175 + $0x74] sm:$0xf] %vm814, %v779
      %845 = vst.msk [vmem:[%s175 + $0x78] sm:$0xf] %vm814, %v780
      %846 = vst.msk [vmem:[%s175 + $0x7c] sm:$0xf] %vm814, %v781
      %s847 = smul.u32 32, %s14
      %p848 = scmp.lt.s32.totalorder %s847, 255
      %s849 = scalar_select %p848, %s847, 255
      %s850 = smul.addr %s849, 4
      %s851 = scalar_lea.vmem %s3, %s850
      // Predicated region
      $region33: #{tpu_custom_call.1} parent=31 // pred_check
        %p852 = pneg %p100
      $region34: #{tpu_custom_call.1} parent=31 // pred_check_branch
        %854 = sbr.rel (%p852) target = $region36
      $region35: #{tpu_custom_call.1} parent=31 // pred_region
        %s855 = smul.u32 32, %s14
      $region36: #{tpu_custom_call.1} parent=31 // pred_fallthru
        _
    $region32: #{tpu_custom_call.1} parent=5 // pred_fallthru
      _
    %p856 = scmp.le.s32.totalorder 2, %s9
    // Predicated region
    $region37: #{tpu_custom_call.1} parent=5 // pred_check
      %p857 = pneg %p856
    $region38: #{tpu_custom_call.1} parent=5 // pred_check_branch
      %859 = sbr.rel (%p857) target = $region40
    $region39: #{tpu_custom_call.1} parent=5 // pred_region
      %s860 = ssub.s32 %s9, 2
      // Predicated region
      $region41: #{tpu_custom_call.1} parent=39 // pred_check
        %p861 = pneg %p106
      $region42: #{tpu_custom_call.1} parent=39 // pred_check_branch
        %863 = sbr.rel (%p861) target = $region44
      $region43: #{tpu_custom_call.1} parent=39 // pred_region
        %s864 = smul.u32 32, %s15
        %p865 = scmp.lt.s32.totalorder %s864, 255
        %s866 = scalar_select %p865, %s864, 255
        %s867 = smul.addr %s866, 4
        %s868 = scalar_lea.vmem %s3, %s867
      $region44: #{tpu_custom_call.1} parent=39 // pred_fallthru
        _
    $region40: #{tpu_custom_call.1} parent=5 // pred_fallthru
      _
  $region6: #{tpu_custom_call.1} parent=0 // loop_footer
    %s13 = sadd.s32 1, %s9
  $region7: #{tpu_custom_call.1} parent=0 // loop_footer_branch
    %8 = sbr.rel target = $region3
  $region8: #{tpu_custom_call.1} parent=0 // loop_exit
    _

</llo_original>
